<compile_context>
chip_gen: v7x
topology: tpu7x:2x2x1
jax: 0.10.0
libtpu: 0.0.40
codegen_flags: <defaults>
</compile_context>

<pallas_src>
import jax
import jax.numpy as jnp
from jax.experimental import pallas as pl
from jax.experimental.pallas import tpu as pltpu

# ---- e3m0 (1 sign, 3 exp, 0 mantissa, bias=3) fake-quant parameters ----
_QMAX = 16.0        # 2^4   largest representable magnitude
_QMIN = 0.25        # 2^-2  smallest nonzero magnitude
_EMIN = -2
_EMAX = 4
_UNDERFLOW = 0.5 * _QMIN   # |y| below this rounds to 0 (midpoint between 0 and QMIN)

_F_PAD = 128        # feature/hidden dims padded to one full lane width


def _e3m0_round(y, bitcast):
    """Round y (already divided by the scale) to the nearest e3m0 value.

    Magnitudes are {0} U {2^e : e in [-2, 4]}, saturating at 16.  Bit-level
    power-of-two rounding (round-half-away-from-zero at value midpoints
    1.5*2^e): adding 0x00400000 to the f32 bits carries into the exponent iff
    the mantissa is >= 0.5.  Runs entirely on the VALU slots (no EUP).

    TODO(synk): exact `quantizer_weight.fit_and_quant` rounding/underflow
    semantics are defined outside the provided module; this implements a
    standard minmax-scaled e3m0 fake-quant as the closest equivalent.
    """
    bits = bitcast(y, jnp.uint32)
    sign = bits & jnp.uint32(0x80000000)
    mag = bits & jnp.uint32(0x7FFFFFFF)
    e = ((mag + jnp.uint32(0x00400000)) >> 23).astype(jnp.int32) - 127
    e = jnp.clip(e, _EMIN, _EMAX)
    pow2_bits = ((e + 127).astype(jnp.uint32) << 23) | sign
    q = bitcast(pow2_bits, jnp.float32)
    return jnp.where(jnp.abs(y) < _UNDERFLOW, 0.0, q)


def linear_model_kernel(scales_ref, x_ref, w1_ref, w2_ref, o_ref):
    # scales_ref: (2,) f32 in SMEM = [scale, inv_scale], hoisted out of kernel.
    scale = scales_ref[0]
    inv_scale = scales_ref[1]

    # x_ref: (128, TB) = (padded features, batch tile), batch on lanes.
    x_t = x_ref[...]

    # ---- activation fake-quant (elementwise, VPU-only bit tricks) ----
    xq_t = scale * _e3m0_round(x_t * inv_scale, pltpu.bitcast)

    # ---- fc1 on the MXU:  h^T = W1 @ xq^T   (torch (out, in) layout, no .T) ----
    h_t = jnp.dot(w1_ref[...], xq_t, preferred_element_type=jnp.float32)
    h_t = jnp.maximum(h_t, 0.0)                      # ReLU on the VPU

    # ---- fc2 on VPU + XLU:  out[n] = sum_h w2[h] * h^T[h, n]  -> (1, TB) ----
    # w2_ref is a (128, 1) column; broadcast across lanes, reduce over sublanes.
    o_ref[...] = jnp.sum(h_t * w2_ref[...], axis=0, keepdims=True)


def linear_model_forward(x, w1, w2, *, block_n=256):
    """x: (N, 10) f32; w1: (10, 10) torch fc1.weight; w2: (1, 10) torch fc2.weight.

    Returns (N, 1) f32.  `block_n` is the batch tile (lane) width; raise it to
    512-2048 for large N (v6e has 128 MiB VMEM, v7x only 64 MiB).
    """
    n, d_in = x.shape
    d_hid, _ = w1.shape
    n_pad = pl.cdiv(n, block_n) * block_n

    # ---- minmax fit over the whole tensor, hoisted out of the kernel ----
    amax = jnp.max(jnp.abs(x))
    scale = jnp.where(amax > 0.0, amax / _QMAX, 1.0).astype(jnp.float32)
    scales = jnp.stack([scale, 1.0 / scale])              # (2,) -> SMEM

    # ---- wrapper-side layout plumbing: transpose + zero-pad to 128 ----
    x_t = jnp.zeros((_F_PAD, n_pad), jnp.float32).at[:d_in, :n].set(x.T)
    w1_p = jnp.zeros((_F_PAD, _F_PAD), jnp.float32).at[:d_hid, :d_in].set(w1)
    w2_c = jnp.zeros((_F_PAD, 1), jnp.float32).at[:d_hid, 0].set(w2[0])

    out = pl.pallas_call(
        linear_model_kernel,
        out_shape=jax.ShapeDtypeStruct((1, n_pad), jnp.float32),
        grid=(n_pad // block_n,),
        in_specs=[
            pl.BlockSpec(memory_space=pltpu.MemorySpace.SMEM),      # scales
            pl.BlockSpec((_F_PAD, block_n), lambda i: (0, i)),      # x^T tile
            pl.BlockSpec((_F_PAD, _F_PAD), lambda i: (0, 0)),       # W1 (resident)
            pl.BlockSpec((_F_PAD, 1), lambda i: (0, 0)),            # w2 (resident)
        ],
        out_specs=pl.BlockSpec((1, block_n), lambda i: (0, i)),     # lane-dense
        compiler_params=pltpu.CompilerParams(
            dimension_semantics=("parallel",)),
    )(scales, x_t, w1_p, w2_c)

    return out[0, :n].reshape(n, 1)


def _reference_forward(x, w1, w2):
    """Plain-JAX reference of the same forward (same quant math)."""
    amax = jnp.max(jnp.abs(x))
    scale = jnp.where(amax > 0.0, amax / _QMAX, 1.0).astype(jnp.float32)
    xq = scale * _e3m0_round(x * (1.0 / scale), jax.lax.bitcast_convert_type)
    h = jnp.maximum(jnp.dot(xq, w1.T, precision=jax.lax.Precision.HIGHEST), 0.0)
    return jnp.dot(h, w2.T, precision=jax.lax.Precision.HIGHEST)


def _torch_linear_init(key, out_features, in_features):
    # kaiming-uniform-style deterministic init: U(-1/sqrt(in), 1/sqrt(in))
    bound = 1.0 / jnp.sqrt(jnp.float32(in_features))
    return jax.random.uniform(key, (out_features, in_features),
                              dtype=jnp.float32, minval=-bound, maxval=bound)


if __name__ == "__main__":
    key = jax.random.PRNGKey(0)
    kx, k1, k2 = jax.random.split(key, 3)

    N, D_IN, D_HID, D_OUT = 300, 10, 10, 1        # grid of 2 batch tiles (block_n=256)
    x = jax.random.normal(kx, (N, D_IN), dtype=jnp.float32)
    w1 = _torch_linear_init(k1, D_HID, D_IN)      # fc1.weight: (10, 10)
    w2 = _torch_linear_init(k2, D_OUT, D_HID)     # fc2.weight: (1, 10)

    out = linear_model_forward(x, w1, w2)
    out = jax.block_until_ready(out)
    assert out.shape == (N, D_OUT)

    # Loose tolerance: MXU f32 matmul accumulation differs slightly from XLA's.
    ref = _reference_forward(x, w1, w2)
    assert bool(jnp.allclose(out, ref, atol=5e-2, rtol=5e-2))
    print("KERNEL_OK")
</pallas_src>

<mosaic_0001>
module attributes {stable_mosaic.version = 11 : i64} {
  func.func @linear_model_kernel(%arg0: i32, %arg1: memref<2xf32, #tpu.memory_space<smem>>, %arg2: memref<128x256xf32, #tpu.memory_space<vmem>>, %arg3: memref<128x128xf32, #tpu.memory_space<vmem>>, %arg4: memref<128x1xf32, #tpu.memory_space<vmem>>, %arg5: memref<1x256xf32, #tpu.memory_space<vmem>>) attributes {dimension_semantics = [#tpu.dimension_semantics<parallel>], iteration_bounds = array<i64: 2>, scalar_prefetch = 0 : i64, scratch_operands = 0 : i64, tpu.core_type = #tpu.core_type<tc>, window_params = [{transform_indices = @transform_0, window_bounds = array<i64: 2>}, {transform_indices = @transform_1, window_bounds = array<i64: 128, 256>}, {pipeline_mode = #tpu.pipeline_mode<synchronous>, transform_indices = @transform_2, window_bounds = array<i64: 128, 128>}, {pipeline_mode = #tpu.pipeline_mode<synchronous>, transform_indices = @transform_3, window_bounds = array<i64: 128, 1>}, {transform_indices = @transform_4, window_bounds = array<i64: 1, 256>}]} {
    %c0 = arith.constant 0 : index
    %0 = memref.load %arg1[%c0] : memref<2xf32, #tpu.memory_space<smem>>
    %c1 = arith.constant 1 : index
    %1 = memref.load %arg1[%c1] : memref<2xf32, #tpu.memory_space<smem>>
    %c0_0 = arith.constant 0 : index
    %c0_1 = arith.constant 0 : index
    %2 = vector.load %arg2[%c0_0, %c0_1] : memref<128x256xf32, #tpu.memory_space<vmem>>, vector<128x256xf32>
    %3 = vector.broadcast %1 : f32 to vector<128x256xf32>
    %4 = arith.mulf %2, %3 : vector<128x256xf32>
    %5 = tpu.bitcast %4 : vector<128x256xf32> -> vector<128x256xi32>
    %c-2147483648_i32 = arith.constant -2147483648 : i32
    %6 = vector.broadcast %c-2147483648_i32 : i32 to vector<128x256xi32>
    %7 = arith.andi %5, %6 : vector<128x256xi32>
    %c2147483647_i32 = arith.constant 2147483647 : i32
    %8 = vector.broadcast %c2147483647_i32 : i32 to vector<128x256xi32>
    %9 = arith.andi %5, %8 : vector<128x256xi32>
    %c4194304_i32 = arith.constant 4194304 : i32
    %10 = vector.broadcast %c4194304_i32 : i32 to vector<128x256xi32>
    %11 = arith.addi %9, %10 : vector<128x256xi32>
    %c23_i32 = arith.constant 23 : i32
    %12 = vector.broadcast %c23_i32 : i32 to vector<128x256xi32>
    %13 = arith.shrui %11, %12 : vector<128x256xi32>
    %c127_i32 = arith.constant 127 : i32
    %14 = vector.broadcast %c127_i32 : i32 to vector<128x256xi32>
    %15 = arith.subi %13, %14 : vector<128x256xi32>
    %c-2_i32 = arith.constant -2 : i32
    %c4_i32 = arith.constant 4 : i32
    %16 = vector.broadcast %c-2_i32 : i32 to vector<128x256xi32>
    %17 = arith.maxsi %16, %15 : vector<128x256xi32>
    %18 = vector.broadcast %c4_i32 : i32 to vector<128x256xi32>
    %19 = arith.minsi %18, %17 : vector<128x256xi32>
    %c127_i32_2 = arith.constant 127 : i32
    %20 = vector.broadcast %c127_i32_2 : i32 to vector<128x256xi32>
    %21 = arith.addi %19, %20 : vector<128x256xi32>
    %c23_i32_3 = arith.constant 23 : i32
    %22 = vector.broadcast %c23_i32_3 : i32 to vector<128x256xi32>
    %23 = arith.shli %21, %22 : vector<128x256xi32>
    %24 = arith.ori %23, %7 : vector<128x256xi32>
    %25 = tpu.bitcast %24 : vector<128x256xi32> -> vector<128x256xf32>
    %26 = math.absf %4 : vector<128x256xf32>
    %cst = arith.constant 1.250000e-01 : f32
    %27 = vector.broadcast %cst : f32 to vector<128x256xf32>
    %28 = arith.cmpf olt, %26, %27 : vector<128x256xf32>
    %cst_4 = arith.constant 0.000000e+00 : f32
    %29 = vector.broadcast %cst_4 : f32 to vector<128x256xf32>
    %30 = arith.select %28, %29, %25 : vector<128x256xi1>, vector<128x256xf32>
    %31 = vector.broadcast %0 : f32 to vector<128x256xf32>
    %32 = arith.mulf %31, %30 : vector<128x256xf32>
    %c0_5 = arith.constant 0 : index
    %c0_6 = arith.constant 0 : index
    %33 = vector.load %arg3[%c0_5, %c0_6] : memref<128x128xf32, #tpu.memory_space<vmem>>, vector<128x128xf32>
    %cst_7 = arith.constant dense<0.000000e+00> : vector<128x256xf32>
    %34 = tpu.matmul %33, %32, %cst_7 {dimension_numbers = #tpu.dot_dimension_numbers<[1], [0], [0], [1], [0, 0, 1, 1], [], []>} : vector<128x128xf32>, vector<128x256xf32>, vector<128x256xf32> -> vector<128x256xf32>
    %cst_8 = arith.constant 0.000000e+00 : f32
    %35 = vector.broadcast %cst_8 : f32 to vector<128x256xf32>
    %36 = arith.maximumf %34, %35 : vector<128x256xf32>
    %c0_9 = arith.constant 0 : index
    %c0_10 = arith.constant 0 : index
    %37 = vector.load %arg4[%c0_9, %c0_10] : memref<128x1xf32, #tpu.memory_space<vmem>>, vector<128x1xf32>
    %38 = vector.broadcast %37 : vector<128x1xf32> to vector<128x256xf32>
    %39 = arith.mulf %36, %38 : vector<128x256xf32>
    %cst_11 = arith.constant dense<0.000000e+00> : vector<256xf32>
    %40 = vector.multi_reduction <add>, %39, %cst_11 [0] : vector<128x256xf32> to vector<256xf32>
    %41 = vector.shape_cast %40 : vector<256xf32> to vector<1x256xf32>
    %c0_12 = arith.constant 0 : index
    %c0_13 = arith.constant 0 : index
    %42 = vector.load %arg5[%c0_12, %c0_13] : memref<1x256xf32, #tpu.memory_space<vmem>>, vector<1x256xf32>
    tpu.vector_store %arg5[%c0_12, %c0_13], %41 {strides = array<i32>} : memref<1x256xf32, #tpu.memory_space<vmem>>, vector<1x256xf32>,
    return
  }
  func.func @transform_0(%arg0: i32) -> i32 {
    %c0_i32 = arith.constant 0 : i32
    %c0_i32_0 = arith.constant 0 : i32
    return %c0_i32 : i32
  }
  func.func @transform_1(%arg0: i32) -> (i32, i32) {
    %c0_i32 = arith.constant 0 : i32
    %c0_i32_0 = arith.constant 0 : i32
    return %c0_i32, %arg0 : i32, i32
  }
  func.func @transform_2(%arg0: i32) -> (i32, i32) {
    %c0_i32 = arith.constant 0 : i32
    %c0_i32_0 = arith.constant 0 : i32
    %c0_i32_1 = arith.constant 0 : i32
    return %c0_i32, %c0_i32_0 : i32, i32
  }
  func.func @transform_3(%arg0: i32) -> (i32, i32) {
    %c0_i32 = arith.constant 0 : i32
    %c0_i32_0 = arith.constant 0 : i32
    %c0_i32_1 = arith.constant 0 : i32
    return %c0_i32, %c0_i32_0 : i32, i32
  }
  func.func @transform_4(%arg0: i32) -> (i32, i32) {
    %c0_i32 = arith.constant 0 : i32
    %c0_i32_0 = arith.constant 0 : i32
    return %c0_i32, %arg0 : i32, i32
  }
}

</mosaic_0001>

<llo_original>
// kernel: tpu_custom_call.1
$region0: #{tpu_custom_call.1}
  #allocation0 [shape = 'u32[]', space=smem, size = 0x4, offset = 0x4, fixed_abs, tag = 'smem constant byte address 0x4 - core index']
  #allocation1 [shape = 'u32[144,128]{1,0:T(1,128)}', space=vmem, size = 0x12000, scoped, tag = 'internal scratch']
  %s0 = inlined_call_operand.vmem [shape: f32[2], index: 0, kind: input, shape index: {}]
  %s1 = inlined_call_operand.hbm [shape: f32[128,512], index: 1, kind: input, shape index: {}]
  %s2 = inlined_call_operand.vmem [shape: f32[128,128], index: 2, kind: input, shape index: {}]
  %s3 = inlined_call_operand.vmem [shape: f32[128,1], index: 3, kind: input, shape index: {}]
  %s4 = inlined_call_operand.hbm [shape: f32[1,512], index: 4, kind: output, shape index: {}]
  %s5 = sld [smem:[#allocation0]]
  $region57: #{tpu_custom_call.1} parent=0
    _
  %s7 = ssub.s32 1, %s5
  %s8 = scalar_select 0, %s7, %s5
  $region1: #{tpu_custom_call.1} parent=0
    #allocation2 [shape = 'u8[512]{0}', space=smem, size = 0x200, scoped, tag = 'input window, operand 0, single buffered']
    #allocation3 [shape = 's32[2]{0}', space=sflag, size = 0x8, scoped, tag = 'scoped memory for tpu_custom_call.1']
    #allocation4 [shape = 's32[2]{0}', space=sflag, size = 0x8, scoped, tag = 'scoped memory for tpu_custom_call.1']
    #allocation5 [shape = 's32[2]{0}', space=sflag, size = 0x8, scoped, tag = 'scoped memory for tpu_custom_call.1']
    #allocation6 [shape = 'u8[262144]{0}', space=vmem, size = 0x40000, scoped, tag = 'input window, operand 1']
    #allocation7 [shape = 'u8[2048]{0}', space=vmem, size = 0x800, scoped, tag = 'output window, operand 0']
    %9 = vsyncpa [#allocation5], 0
    %10 = vsyncpa [#allocation3], 0
    %s11 = scalar_lea.sflag [#allocation3], 1
    %12 = vsyncpa %s11, 0
    %13 = vsyncpa [#allocation4], 0
    %s14 = scalar_lea.sflag [#allocation4], 1
    %15 = vsyncpa %s14, 0
    loop: start=0, step=1, limit=4
    $region2: #{tpu_custom_call.1} parent=1 // loop_pre_header
      _
    $region3: #{tpu_custom_call.1} parent=1 // loop_header
      %s17 = sphi 0, %s21
      %p18 = scmp.ge.s32.totalorder %s17, 4
      %s25 = sphi 0, %s25
      %s27 = sphi 0, %s25
      %s28 = sphi 0, %s27
      %s42 = sphi 0, %s28
      %s48 = sphi 0, %s50
      %s51 = sphi 0, %s48
      %s52 = sphi 0, %s51
      %s68 = sphi 0, %s52
      %s72 = sphi 0, %s72
      %s74 = sphi 0, %s72
      %s75 = sphi 0, %s74
      %s89 = sphi 0, %s75
      %s93 = sphi 0, %s93
      %s95 = sphi 0, %s93
      %s96 = sphi 0, %s95
      %s110 = sphi 0, %s96
      %s116 = sphi 0, %s118
      %s119 = sphi 0, %s116
      %s120 = sphi 0, %s119
      %s136 = sphi 0, %s120
    $region4: #{tpu_custom_call.1} parent=1 // loop_header_branch
      %20 = sbr.rel (%p18) target = $region8
    $region5: #{tpu_custom_call.1} parent=1 // loop_body
      %s22 = ssub.s32 %s17, 1
      %s23 = ssub.s32 %s17, 2
      %s24 = sadd.s32 %s17, 1
      %s26 = sadd.s32 %s25, 1
      %p29 = scmp.eq.s32.totalorder %s17, 1
      %p30 = scmp.ne.s32.totalorder %s25, %s27
      %p31 = scmp.eq.s32.totalorder %s17, 0
      %p32 = por %p30, %p31
      %p33 = scmp.ne.s32.totalorder %s25, %s27
      %p34 = scmp.eq.s32.totalorder %s22, 1
      %p35 = por %p33, %p34
      %p36 = scmp.ne.s32.totalorder %s27, %s28
      %p37 = scmp.eq.s32.totalorder %s22, 0
      %p38 = por %p36, %p37
      %p39 = scmp.ne.s32.totalorder %s27, %s28
      %p40 = scmp.eq.s32.totalorder %s23, 1
      %p41 = por %p39, %p40
      %p43 = scmp.ne.s32.totalorder %s28, %s42
      %p44 = scmp.eq.s32.totalorder %s23, 0
      %p45 = por %p43, %p44
      %s46 = ssub.s32 %s17, %s24
      %p47 = scmp.eq.s32.totalorder %s46, 0
      %s49 = sadd.s32 %s48, 1
      %s50 = scalar_select %p47, %s48, %s49
      %p53 = pneg %p47
      %p54 = scmp.eq.s32.totalorder %s17, 1
      %p55 = por %p53, %p54
      %p56 = scmp.ne.s32.totalorder %s48, %s51
      %p57 = scmp.eq.s32.totalorder %s17, 0
      %p58 = por %p56, %p57
      %p59 = scmp.ne.s32.totalorder %s48, %s51
      %p60 = scmp.eq.s32.totalorder %s22, 1
      %p61 = por %p59, %p60
      %p62 = scmp.ne.s32.totalorder %s51, %s52
      %p63 = scmp.eq.s32.totalorder %s22, 0
      %p64 = por %p62, %p63
      %p65 = scmp.ne.s32.totalorder %s51, %s52
      %p66 = scmp.eq.s32.totalorder %s23, 1
      %p67 = por %p65, %p66
      %p69 = scmp.ne.s32.totalorder %s52, %s68
      %p70 = scmp.eq.s32.totalorder %s23, 0
      %p71 = por %p69, %p70
      %s73 = sadd.s32 %s72, 1
      %p76 = scmp.eq.s32.totalorder %s17, 1
      %p77 = scmp.ne.s32.totalorder %s72, %s74
      %p78 = scmp.eq.s32.totalorder %s17, 0
      %p79 = por %p77, %p78
      %p80 = scmp.ne.s32.totalorder %s72, %s74
      %p81 = scmp.eq.s32.totalorder %s22, 1
      %p82 = por %p80, %p81
      %p83 = scmp.ne.s32.totalorder %s74, %s75
      %p84 = scmp.eq.s32.totalorder %s22, 0
      %p85 = por %p83, %p84
      %p86 = scmp.ne.s32.totalorder %s74, %s75
      %p87 = scmp.eq.s32.totalorder %s23, 1
      %p88 = por %p86, %p87
      %p90 = scmp.ne.s32.totalorder %s75, %s89
      %p91 = scmp.eq.s32.totalorder %s23, 0
      %p92 = por %p90, %p91
      %s94 = sadd.s32 %s93, 1
      %p97 = scmp.eq.s32.totalorder %s17, 1
      %p98 = scmp.ne.s32.totalorder %s93, %s95
      %p99 = scmp.eq.s32.totalorder %s17, 0
      %p100 = por %p98, %p99
      %p101 = scmp.ne.s32.totalorder %s93, %s95
      %p102 = scmp.eq.s32.totalorder %s22, 1
      %p103 = por %p101, %p102
      %p104 = scmp.ne.s32.totalorder %s95, %s96
      %p105 = scmp.eq.s32.totalorder %s22, 0
      %p106 = por %p104, %p105
      %p107 = scmp.ne.s32.totalorder %s95, %s96
      %p108 = scmp.eq.s32.totalorder %s23, 1
      %p109 = por %p107, %p108
      %p111 = scmp.ne.s32.totalorder %s96, %s110
      %p112 = scmp.eq.s32.totalorder %s23, 0
      %p113 = por %p111, %p112
      %s114 = ssub.s32 %s17, %s24
      %p115 = scmp.eq.s32.totalorder %s114, 0
      %s117 = sadd.s32 %s116, 1
      %s118 = scalar_select %p115, %s116, %s117
      %p121 = pneg %p115
      %p122 = scmp.eq.s32.totalorder %s17, 1
      %p123 = por %p121, %p122
      %p124 = scmp.ne.s32.totalorder %s116, %s119
      %p125 = scmp.eq.s32.totalorder %s17, 0
      %p126 = por %p124, %p125
      %p127 = scmp.ne.s32.totalorder %s116, %s119
      %p128 = scmp.eq.s32.totalorder %s22, 1
      %p129 = por %p127, %p128
      %p130 = scmp.ne.s32.totalorder %s119, %s120
      %p131 = scmp.eq.s32.totalorder %s22, 0
      %p132 = por %p130, %p131
      %p133 = scmp.ne.s32.totalorder %s119, %s120
      %p134 = scmp.eq.s32.totalorder %s23, 1
      %p135 = por %p133, %p134
      %p137 = scmp.ne.s32.totalorder %s120, %s136
      %p138 = scmp.eq.s32.totalorder %s23, 0
      %p139 = por %p137, %p138
      %p140 = scmp.le.s32.totalorder 1, %s17
      %p141 = scmp.lt.s32.totalorder %s17, 3
      %p142 = pnand %p140, %p141
      %p143 = pneg %p142
      // Predicated region
      $region9: #{tpu_custom_call.1} parent=5 // pred_check
        _
      $region10: #{tpu_custom_call.1} parent=5 // pred_check_branch
        %145 = sbr.rel (%p142) target = $region12
      $region11: #{tpu_custom_call.1} parent=5 // pred_region
        %s146 = ssub.s32 %s17, 1
        // Predicated region
        $region13: #{tpu_custom_call.1} parent=11 // pred_check
          %p147 = pneg %p38
        $region14: #{tpu_custom_call.1} parent=11 // pred_check_branch
          %149 = sbr.rel (%p147) target = $region16
        $region15: #{tpu_custom_call.1} parent=11 // pred_region
          %s151 = ssub.s32 16, 16
          %152 = vsyncadd [#allocation5], %s151
          %s154 = sshll.u32 %s0, 4
          %s155 = int_to_ptr.vmem [resolvable:$true] %s154
          %157 = dma.vmem_to_smem %s155, 16, [#allocation2], [#allocation5]
        $region16: #{tpu_custom_call.1} parent=11 // pred_fallthru
          _
        // Predicated region
        $region17: #{tpu_custom_call.1} parent=11 // pred_check
          %p158 = pneg %p85
        $region18: #{tpu_custom_call.1} parent=11 // pred_check_branch
          %160 = sbr.rel (%p158) target = $region20
        $region19: #{tpu_custom_call.1} parent=11 // pred_region
          _
        $region20: #{tpu_custom_call.1} parent=11 // pred_fallthru
          _
        // Predicated region
        $region21: #{tpu_custom_call.1} parent=11 // pred_check
          %p161 = pneg %p106
        $region22: #{tpu_custom_call.1} parent=11 // pred_check_branch
          %163 = sbr.rel (%p161) target = $region24
        $region23: #{tpu_custom_call.1} parent=11 // pred_region
          _
        $region24: #{tpu_custom_call.1} parent=11 // pred_fallthru
          _
      $region12: #{tpu_custom_call.1} parent=5 // pred_fallthru
        _
      %p164 = scmp.lt.s32.totalorder %s17, 2
      // Predicated region
      $region25: #{tpu_custom_call.1} parent=5 // pred_check
        %p165 = pneg %p164
      $region26: #{tpu_custom_call.1} parent=5 // pred_check_branch
        %167 = sbr.rel (%p165) target = $region28
      $region27: #{tpu_custom_call.1} parent=5 // pred_region
        // Predicated region
        $region29: #{tpu_custom_call.1} parent=27 // pred_check
          %p168 = pneg %p58
        $region30: #{tpu_custom_call.1} parent=27 // pred_check_branch
          %170 = sbr.rel (%p168) target = $region32
        $region31: #{tpu_custom_call.1} parent=27 // pred_region
          %s171 = sand.u32 %s48, 1
          %s172 = scalar_lea.sflag [#allocation3], %s171
          %s173 = sand.u32 %s48, 1
          %s174 = smul.addr %s173, 256
          %s175 = scalar_lea.vmem [#allocation6], %s174
          %s176 = smul.u32 2, %s17
          %s178 = ssub.s32 4096, 4096
          %179 = vsyncadd %s172, %s178
          %s180 = smul.addr %s176, 128
          %s181 = scalar_lea.hbm %s1, %s180
          %s182 = sshll.u32 %s175, 4
          %s183 = int_to_ptr.vmem [resolvable:$true] %s182
          %188 = dma.hbm_to_vmem [thread:$0]  %s181, 4096, %s183, %s172, 512, 256, 16
        $region32: #{tpu_custom_call.1} parent=27 // pred_fallthru
          _
      $region28: #{tpu_custom_call.1} parent=5 // pred_fallthru
        _
      %p189 = scmp.le.s32.totalorder 1, %s17
      %p190 = scmp.lt.s32.totalorder %s17, 3
      %p191 = pnand %p189, %p190
      %p192 = pneg %p191
      // Predicated region
      $region33: #{tpu_custom_call.1} parent=5 // pred_check
        _
      $region34: #{tpu_custom_call.1} parent=5 // pred_check_branch
        %194 = sbr.rel (%p191) target = $region36
      $region35: #{tpu_custom_call.1} parent=5 // pred_region
        %s195 = ssub.s32 %s17, 1
        // Predicated region
        $region37: #{tpu_custom_call.1} parent=35 // pred_check
          %p196 = pneg %p38
        $region38: #{tpu_custom_call.1} parent=35 // pred_check_branch
          %198 = sbr.rel (%p196) target = $region40
        $region39: #{tpu_custom_call.1} parent=35 // pred_region
          %199 = dma.done [#allocation5], 16
        $region40: #{tpu_custom_call.1} parent=35 // pred_fallthru
          _
        %s200 = sand.u32 %s51, 1
        %s201 = scalar_lea.sflag [#allocation3], %s200
        %s202 = sand.u32 %s51, 1
        %s203 = smul.addr %s202, 256
        %s204 = scalar_lea.vmem [#allocation6], %s203
        // Predicated region
        $region41: #{tpu_custom_call.1} parent=35 // pred_check
          %p205 = pneg %p64
        $region42: #{tpu_custom_call.1} parent=35 // pred_check_branch
          %207 = sbr.rel (%p205) target = $region44
        $region43: #{tpu_custom_call.1} parent=35 // pred_region
          %208 = dma.done %s201, 4096
        $region44: #{tpu_custom_call.1} parent=35 // pred_fallthru
          _
        %209 = sfence
        %p210 = pneg %p38
        %p211 = pneg %p35
        %s212 = sand.u32 %s51, 1
        %s213 = scalar_lea.sflag [#allocation3], %s212
        %s214 = sand.u32 %s51, 1
        %s215 = smul.addr %s214, 256
        %s216 = scalar_lea.vmem [#allocation6], %s215
        %p217 = pneg %p64
        %p218 = pneg %p61
        %p219 = pneg %p85
        %p220 = pneg %p82
        %p221 = pneg %p106
        %p222 = pneg %p103
        %p223 = pneg %p132
        %p224 = pneg %p129
        %s225 = sand.u32 %s119, 1
        %s226 = scalar_lea.sflag [#allocation4], %s225
        %s227 = sand.u32 %s119, 1
        %s228 = smul.addr %s227, 2
        %s229 = scalar_lea.vmem [#allocation7], %s228
        %s230 = smul.u32 2, %s22
        %s231 = smul.u32 2, %s22
        %s232 = sld [smem:[#allocation2]]
        %s233 = sld [smem:[#allocation2 + $0x1]]
        %v234 = vld [vmem:[%s204] sm:$0xff]
        %v235 = vld [vmem:[%s204 + $0x8] sm:$0xff]
        %v236 = vld [vmem:[%s204 + $0x10] sm:$0xff]
        %v237 = vld [vmem:[%s204 + $0x18] sm:$0xff]
        %v238 = vld [vmem:[%s204 + $0x20] sm:$0xff]
        %v239 = vld [vmem:[%s204 + $0x28] sm:$0xff]
        %v240 = vld [vmem:[%s204 + $0x30] sm:$0xff]
        %v241 = vld [vmem:[%s204 + $0x38] sm:$0xff]
        %v242 = vld [vmem:[%s204 + $0x40] sm:$0xff]
        %v243 = vld [vmem:[%s204 + $0x48] sm:$0xff]
        %v244 = vld [vmem:[%s204 + $0x50] sm:$0xff]
        %v245 = vld [vmem:[%s204 + $0x58] sm:$0xff]
        %v246 = vld [vmem:[%s204 + $0x60] sm:$0xff]
        %v247 = vld [vmem:[%s204 + $0x68] sm:$0xff]
        %v248 = vld [vmem:[%s204 + $0x70] sm:$0xff]
        %v249 = vld [vmem:[%s204 + $0x78] sm:$0xff]
        %v250 = vld [vmem:[%s204 + $0x80] sm:$0xff]
        %v251 = vld [vmem:[%s204 + $0x88] sm:$0xff]
        %v252 = vld [vmem:[%s204 + $0x90] sm:$0xff]
        %v253 = vld [vmem:[%s204 + $0x98] sm:$0xff]
        %v254 = vld [vmem:[%s204 + $0xa0] sm:$0xff]
        %v255 = vld [vmem:[%s204 + $0xa8] sm:$0xff]
        %v256 = vld [vmem:[%s204 + $0xb0] sm:$0xff]
        %v257 = vld [vmem:[%s204 + $0xb8] sm:$0xff]
        %v258 = vld [vmem:[%s204 + $0xc0] sm:$0xff]
        %v259 = vld [vmem:[%s204 + $0xc8] sm:$0xff]
        %v260 = vld [vmem:[%s204 + $0xd0] sm:$0xff]
        %v261 = vld [vmem:[%s204 + $0xd8] sm:$0xff]
        %v262 = vld [vmem:[%s204 + $0xe0] sm:$0xff]
        %v263 = vld [vmem:[%s204 + $0xe8] sm:$0xff]
        %v264 = vld [vmem:[%s204 + $0xf0] sm:$0xff]
        %v265 = vld [vmem:[%s204 + $0xf8] sm:$0xff]
        %v266 = vstv %s233
        %v267 = vmul.f32 %v234, %v266
        %v268 = vmul.f32 %v235, %v266
        %v269 = vmul.f32 %v236, %v266
        %v270 = vmul.f32 %v237, %v266
        %v271 = vmul.f32 %v238, %v266
        %v272 = vmul.f32 %v239, %v266
        %v273 = vmul.f32 %v240, %v266
        %v274 = vmul.f32 %v241, %v266
        %v275 = vmul.f32 %v242, %v266
        %v276 = vmul.f32 %v243, %v266
        %v277 = vmul.f32 %v244, %v266
        %v278 = vmul.f32 %v245, %v266
        %v279 = vmul.f32 %v246, %v266
        %v280 = vmul.f32 %v247, %v266
        %v281 = vmul.f32 %v248, %v266
        %v282 = vmul.f32 %v249, %v266
        %v283 = vmul.f32 %v250, %v266
        %v284 = vmul.f32 %v251, %v266
        %v285 = vmul.f32 %v252, %v266
        %v286 = vmul.f32 %v253, %v266
        %v287 = vmul.f32 %v254, %v266
        %v288 = vmul.f32 %v255, %v266
        %v289 = vmul.f32 %v256, %v266
        %v290 = vmul.f32 %v257, %v266
        %v291 = vmul.f32 %v258, %v266
        %v292 = vmul.f32 %v259, %v266
        %v293 = vmul.f32 %v260, %v266
        %v294 = vmul.f32 %v261, %v266
        %v295 = vmul.f32 %v262, %v266
        %v296 = vmul.f32 %v263, %v266
        %v297 = vmul.f32 %v264, %v266
        %v298 = vmul.f32 %v265, %v266
        %v331 = vand.u32 %v267, 2147483648
        %v332 = vand.u32 %v268, 2147483648
        %v333 = vand.u32 %v269, 2147483648
        %v334 = vand.u32 %v270, 2147483648
        %v335 = vand.u32 %v271, 2147483648
        %v336 = vand.u32 %v272, 2147483648
        %v337 = vand.u32 %v273, 2147483648
        %v338 = vand.u32 %v274, 2147483648
        %v339 = vand.u32 %v275, 2147483648
        %v340 = vand.u32 %v276, 2147483648
        %v341 = vand.u32 %v277, 2147483648
        %v342 = vand.u32 %v278, 2147483648
        %v343 = vand.u32 %v279, 2147483648
        %v344 = vand.u32 %v280, 2147483648
        %v345 = vand.u32 %v281, 2147483648
        %v346 = vand.u32 %v282, 2147483648
        %v347 = vand.u32 %v283, 2147483648
        %v348 = vand.u32 %v284, 2147483648
        %v349 = vand.u32 %v285, 2147483648
        %v350 = vand.u32 %v286, 2147483648
        %v351 = vand.u32 %v287, 2147483648
        %v352 = vand.u32 %v288, 2147483648
        %v353 = vand.u32 %v289, 2147483648
        %v354 = vand.u32 %v290, 2147483648
        %v355 = vand.u32 %v291, 2147483648
        %v356 = vand.u32 %v292, 2147483648
        %v357 = vand.u32 %v293, 2147483648
        %v358 = vand.u32 %v294, 2147483648
        %v359 = vand.u32 %v295, 2147483648
        %v360 = vand.u32 %v296, 2147483648
        %v361 = vand.u32 %v297, 2147483648
        %v362 = vand.u32 %v298, 2147483648
        %v363 = vand.u32 %v267, 2147483647
        %v364 = vand.u32 %v268, 2147483647
        %v365 = vand.u32 %v269, 2147483647
        %v366 = vand.u32 %v270, 2147483647
        %v367 = vand.u32 %v271, 2147483647
        %v368 = vand.u32 %v272, 2147483647
        %v369 = vand.u32 %v273, 2147483647
        %v370 = vand.u32 %v274, 2147483647
        %v371 = vand.u32 %v275, 2147483647
        %v372 = vand.u32 %v276, 2147483647
        %v373 = vand.u32 %v277, 2147483647
        %v374 = vand.u32 %v278, 2147483647
        %v375 = vand.u32 %v279, 2147483647
        %v376 = vand.u32 %v280, 2147483647
        %v377 = vand.u32 %v281, 2147483647
        %v378 = vand.u32 %v282, 2147483647
        %v379 = vand.u32 %v283, 2147483647
        %v380 = vand.u32 %v284, 2147483647
        %v381 = vand.u32 %v285, 2147483647
        %v382 = vand.u32 %v286, 2147483647
        %v383 = vand.u32 %v287, 2147483647
        %v384 = vand.u32 %v288, 2147483647
        %v385 = vand.u32 %v289, 2147483647
        %v386 = vand.u32 %v290, 2147483647
        %v387 = vand.u32 %v291, 2147483647
        %v388 = vand.u32 %v292, 2147483647
        %v389 = vand.u32 %v293, 2147483647
        %v390 = vand.u32 %v294, 2147483647
        %v391 = vand.u32 %v295, 2147483647
        %v392 = vand.u32 %v296, 2147483647
        %v393 = vand.u32 %v297, 2147483647
        %v394 = vand.u32 %v298, 2147483647
        %v395 = vadd.s32 %v363, 4194304
        %v396 = vadd.s32 %v364, 4194304
        %v397 = vadd.s32 %v365, 4194304
        %v398 = vadd.s32 %v366, 4194304
        %v399 = vadd.s32 %v367, 4194304
        %v400 = vadd.s32 %v368, 4194304
        %v401 = vadd.s32 %v369, 4194304
        %v402 = vadd.s32 %v370, 4194304
        %v403 = vadd.s32 %v371, 4194304
        %v404 = vadd.s32 %v372, 4194304
        %v405 = vadd.s32 %v373, 4194304
        %v406 = vadd.s32 %v374, 4194304
        %v407 = vadd.s32 %v375, 4194304
        %v408 = vadd.s32 %v376, 4194304
        %v409 = vadd.s32 %v377, 4194304
        %v410 = vadd.s32 %v378, 4194304
        %v411 = vadd.s32 %v379, 4194304
        %v412 = vadd.s32 %v380, 4194304
        %v413 = vadd.s32 %v381, 4194304
        %v414 = vadd.s32 %v382, 4194304
        %v415 = vadd.s32 %v383, 4194304
        %v416 = vadd.s32 %v384, 4194304
        %v417 = vadd.s32 %v385, 4194304
        %v418 = vadd.s32 %v386, 4194304
        %v419 = vadd.s32 %v387, 4194304
        %v420 = vadd.s32 %v388, 4194304
        %v421 = vadd.s32 %v389, 4194304
        %v422 = vadd.s32 %v390, 4194304
        %v423 = vadd.s32 %v391, 4194304
        %v424 = vadd.s32 %v392, 4194304
        %v425 = vadd.s32 %v393, 4194304
        %v426 = vadd.s32 %v394, 4194304
        %v427 = vshrl.u32 %v395, 23
        %v428 = vshrl.u32 %v396, 23
        %v429 = vshrl.u32 %v397, 23
        %v430 = vshrl.u32 %v398, 23
        %v431 = vshrl.u32 %v399, 23
        %v432 = vshrl.u32 %v400, 23
        %v433 = vshrl.u32 %v401, 23
        %v434 = vshrl.u32 %v402, 23
        %v435 = vshrl.u32 %v403, 23
        %v436 = vshrl.u32 %v404, 23
        %v437 = vshrl.u32 %v405, 23
        %v438 = vshrl.u32 %v406, 23
        %v439 = vshrl.u32 %v407, 23
        %v440 = vshrl.u32 %v408, 23
        %v441 = vshrl.u32 %v409, 23
        %v442 = vshrl.u32 %v410, 23
        %v443 = vshrl.u32 %v411, 23
        %v444 = vshrl.u32 %v412, 23
        %v445 = vshrl.u32 %v413, 23
        %v446 = vshrl.u32 %v414, 23
        %v447 = vshrl.u32 %v415, 23
        %v448 = vshrl.u32 %v416, 23
        %v449 = vshrl.u32 %v417, 23
        %v450 = vshrl.u32 %v418, 23
        %v451 = vshrl.u32 %v419, 23
        %v452 = vshrl.u32 %v420, 23
        %v453 = vshrl.u32 %v421, 23
        %v454 = vshrl.u32 %v422, 23
        %v455 = vshrl.u32 %v423, 23
        %v456 = vshrl.u32 %v424, 23
        %v457 = vshrl.u32 %v425, 23
        %v458 = vshrl.u32 %v426, 23
        %v459 = vsub.s32 %v427, 127
        %v460 = vsub.s32 %v428, 127
        %v461 = vsub.s32 %v429, 127
        %v462 = vsub.s32 %v430, 127
        %v463 = vsub.s32 %v431, 127
        %v464 = vsub.s32 %v432, 127
        %v465 = vsub.s32 %v433, 127
        %v466 = vsub.s32 %v434, 127
        %v467 = vsub.s32 %v435, 127
        %v468 = vsub.s32 %v436, 127
        %v469 = vsub.s32 %v437, 127
        %v470 = vsub.s32 %v438, 127
        %v471 = vsub.s32 %v439, 127
        %v472 = vsub.s32 %v440, 127
        %v473 = vsub.s32 %v441, 127
        %v474 = vsub.s32 %v442, 127
        %v475 = vsub.s32 %v443, 127
        %v476 = vsub.s32 %v444, 127
        %v477 = vsub.s32 %v445, 127
        %v478 = vsub.s32 %v446, 127
        %v479 = vsub.s32 %v447, 127
        %v480 = vsub.s32 %v448, 127
        %v481 = vsub.s32 %v449, 127
        %v482 = vsub.s32 %v450, 127
        %v483 = vsub.s32 %v451, 127
        %v484 = vsub.s32 %v452, 127
        %v485 = vsub.s32 %v453, 127
        %v486 = vsub.s32 %v454, 127
        %v487 = vsub.s32 %v455, 127
        %v488 = vsub.s32 %v456, 127
        %v489 = vsub.s32 %v457, 127
        %v490 = vsub.s32 %v458, 127
        %vm491 = vcmp.gt.s32.totalorder %v459, 4294967294
        %v492 = vsel %vm491, %v459, 4294967294
        %vm493 = vcmp.gt.s32.totalorder %v460, 4294967294
        %v494 = vsel %vm493, %v460, 4294967294
        %vm495 = vcmp.gt.s32.totalorder %v461, 4294967294
        %v496 = vsel %vm495, %v461, 4294967294
        %vm497 = vcmp.gt.s32.totalorder %v462, 4294967294
        %v498 = vsel %vm497, %v462, 4294967294
        %vm499 = vcmp.gt.s32.totalorder %v463, 4294967294
        %v500 = vsel %vm499, %v463, 4294967294
        %vm501 = vcmp.gt.s32.totalorder %v464, 4294967294
        %v502 = vsel %vm501, %v464, 4294967294
        %vm503 = vcmp.gt.s32.totalorder %v465, 4294967294
        %v504 = vsel %vm503, %v465, 4294967294
        %vm505 = vcmp.gt.s32.totalorder %v466, 4294967294
        %v506 = vsel %vm505, %v466, 4294967294
        %vm507 = vcmp.gt.s32.totalorder %v467, 4294967294
        %v508 = vsel %vm507, %v467, 4294967294
        %vm509 = vcmp.gt.s32.totalorder %v468, 4294967294
        %v510 = vsel %vm509, %v468, 4294967294
        %vm511 = vcmp.gt.s32.totalorder %v469, 4294967294
        %v512 = vsel %vm511, %v469, 4294967294
        %vm513 = vcmp.gt.s32.totalorder %v470, 4294967294
        %v514 = vsel %vm513, %v470, 4294967294
        %vm515 = vcmp.gt.s32.totalorder %v471, 4294967294
        %v516 = vsel %vm515, %v471, 4294967294
        %vm517 = vcmp.gt.s32.totalorder %v472, 4294967294
        %v518 = vsel %vm517, %v472, 4294967294
        %vm519 = vcmp.gt.s32.totalorder %v473, 4294967294
        %v520 = vsel %vm519, %v473, 4294967294
        %vm521 = vcmp.gt.s32.totalorder %v474, 4294967294
        %v522 = vsel %vm521, %v474, 4294967294
        %vm523 = vcmp.gt.s32.totalorder %v475, 4294967294
        %v524 = vsel %vm523, %v475, 4294967294
        %vm525 = vcmp.gt.s32.totalorder %v476, 4294967294
        %v526 = vsel %vm525, %v476, 4294967294
        %vm527 = vcmp.gt.s32.totalorder %v477, 4294967294
        %v528 = vsel %vm527, %v477, 4294967294
        %vm529 = vcmp.gt.s32.totalorder %v478, 4294967294
        %v530 = vsel %vm529, %v478, 4294967294
        %vm531 = vcmp.gt.s32.totalorder %v479, 4294967294
        %v532 = vsel %vm531, %v479, 4294967294
        %vm533 = vcmp.gt.s32.totalorder %v480, 4294967294
        %v534 = vsel %vm533, %v480, 4294967294
        %vm535 = vcmp.gt.s32.totalorder %v481, 4294967294
        %v536 = vsel %vm535, %v481, 4294967294
        %vm537 = vcmp.gt.s32.totalorder %v482, 4294967294
        %v538 = vsel %vm537, %v482, 4294967294
        %vm539 = vcmp.gt.s32.totalorder %v483, 4294967294
        %v540 = vsel %vm539, %v483, 4294967294
        %vm541 = vcmp.gt.s32.totalorder %v484, 4294967294
        %v542 = vsel %vm541, %v484, 4294967294
        %vm543 = vcmp.gt.s32.totalorder %v485, 4294967294
        %v544 = vsel %vm543, %v485, 4294967294
        %vm545 = vcmp.gt.s32.totalorder %v486, 4294967294
        %v546 = vsel %vm545, %v486, 4294967294
        %vm547 = vcmp.gt.s32.totalorder %v487, 4294967294
        %v548 = vsel %vm547, %v487, 4294967294
        %vm549 = vcmp.gt.s32.totalorder %v488, 4294967294
        %v550 = vsel %vm549, %v488, 4294967294
        %vm551 = vcmp.gt.s32.totalorder %v489, 4294967294
        %v552 = vsel %vm551, %v489, 4294967294
        %vm553 = vcmp.gt.s32.totalorder %v490, 4294967294
        %v554 = vsel %vm553, %v490, 4294967294
        %vm555 = vcmp.lt.s32.totalorder %v492, 4
        %v556 = vsel %vm555, %v492, 4
        %vm557 = vcmp.lt.s32.totalorder %v494, 4
        %v558 = vsel %vm557, %v494, 4
        %vm559 = vcmp.lt.s32.totalorder %v496, 4
        %v560 = vsel %vm559, %v496, 4
        %vm561 = vcmp.lt.s32.totalorder %v498, 4
        %v562 = vsel %vm561, %v498, 4
        %vm563 = vcmp.lt.s32.totalorder %v500, 4
        %v564 = vsel %vm563, %v500, 4
        %vm565 = vcmp.lt.s32.totalorder %v502, 4
        %v566 = vsel %vm565, %v502, 4
        %vm567 = vcmp.lt.s32.totalorder %v504, 4
        %v568 = vsel %vm567, %v504, 4
        %vm569 = vcmp.lt.s32.totalorder %v506, 4
        %v570 = vsel %vm569, %v506, 4
        %vm571 = vcmp.lt.s32.totalorder %v508, 4
        %v572 = vsel %vm571, %v508, 4
        %vm573 = vcmp.lt.s32.totalorder %v510, 4
        %v574 = vsel %vm573, %v510, 4
        %vm575 = vcmp.lt.s32.totalorder %v512, 4
        %v576 = vsel %vm575, %v512, 4
        %vm577 = vcmp.lt.s32.totalorder %v514, 4
        %v578 = vsel %vm577, %v514, 4
        %vm579 = vcmp.lt.s32.totalorder %v516, 4
        %v580 = vsel %vm579, %v516, 4
        %vm581 = vcmp.lt.s32.totalorder %v518, 4
        %v582 = vsel %vm581, %v518, 4
        %vm583 = vcmp.lt.s32.totalorder %v520, 4
        %v584 = vsel %vm583, %v520, 4
        %vm585 = vcmp.lt.s32.totalorder %v522, 4
        %v586 = vsel %vm585, %v522, 4
        %vm587 = vcmp.lt.s32.totalorder %v524, 4
        %v588 = vsel %vm587, %v524, 4
        %vm589 = vcmp.lt.s32.totalorder %v526, 4
        %v590 = vsel %vm589, %v526, 4
        %vm591 = vcmp.lt.s32.totalorder %v528, 4
        %v592 = vsel %vm591, %v528, 4
        %vm593 = vcmp.lt.s32.totalorder %v530, 4
        %v594 = vsel %vm593, %v530, 4
        %vm595 = vcmp.lt.s32.totalorder %v532, 4
        %v596 = vsel %vm595, %v532, 4
        %vm597 = vcmp.lt.s32.totalorder %v534, 4
        %v598 = vsel %vm597, %v534, 4
        %vm599 = vcmp.lt.s32.totalorder %v536, 4
        %v600 = vsel %vm599, %v536, 4
        %vm601 = vcmp.lt.s32.totalorder %v538, 4
        %v602 = vsel %vm601, %v538, 4
        %vm603 = vcmp.lt.s32.totalorder %v540, 4
        %v604 = vsel %vm603, %v540, 4
        %vm605 = vcmp.lt.s32.totalorder %v542, 4
        %v606 = vsel %vm605, %v542, 4
        %vm607 = vcmp.lt.s32.totalorder %v544, 4
        %v608 = vsel %vm607, %v544, 4
        %vm609 = vcmp.lt.s32.totalorder %v546, 4
        %v610 = vsel %vm609, %v546, 4
        %vm611 = vcmp.lt.s32.totalorder %v548, 4
        %v612 = vsel %vm611, %v548, 4
        %vm613 = vcmp.lt.s32.totalorder %v550, 4
        %v614 = vsel %vm613, %v550, 4
        %vm615 = vcmp.lt.s32.totalorder %v552, 4
        %v616 = vsel %vm615, %v552, 4
        %vm617 = vcmp.lt.s32.totalorder %v554, 4
        %v618 = vsel %vm617, %v554, 4
        %v619 = vadd.s32 %v556, 127
        %v620 = vadd.s32 %v558, 127
        %v621 = vadd.s32 %v560, 127
        %v622 = vadd.s32 %v562, 127
        %v623 = vadd.s32 %v564, 127
        %v624 = vadd.s32 %v566, 127
        %v625 = vadd.s32 %v568, 127
        %v626 = vadd.s32 %v570, 127
        %v627 = vadd.s32 %v572, 127
        %v628 = vadd.s32 %v574, 127
        %v629 = vadd.s32 %v576, 127
        %v630 = vadd.s32 %v578, 127
        %v631 = vadd.s32 %v580, 127
        %v632 = vadd.s32 %v582, 127
        %v633 = vadd.s32 %v584, 127
        %v634 = vadd.s32 %v586, 127
        %v635 = vadd.s32 %v588, 127
        %v636 = vadd.s32 %v590, 127
        %v637 = vadd.s32 %v592, 127
        %v638 = vadd.s32 %v594, 127
        %v639 = vadd.s32 %v596, 127
        %v640 = vadd.s32 %v598, 127
        %v641 = vadd.s32 %v600, 127
        %v642 = vadd.s32 %v602, 127
        %v643 = vadd.s32 %v604, 127
        %v644 = vadd.s32 %v606, 127
        %v645 = vadd.s32 %v608, 127
        %v646 = vadd.s32 %v610, 127
        %v647 = vadd.s32 %v612, 127
        %v648 = vadd.s32 %v614, 127
        %v649 = vadd.s32 %v616, 127
        %v650 = vadd.s32 %v618, 127
        %v651 = vshll.u32 %v619, 23
        %v652 = vshll.u32 %v620, 23
        %v653 = vshll.u32 %v621, 23
        %v654 = vshll.u32 %v622, 23
        %v655 = vshll.u32 %v623, 23
        %v656 = vshll.u32 %v624, 23
        %v657 = vshll.u32 %v625, 23
        %v658 = vshll.u32 %v626, 23
        %v659 = vshll.u32 %v627, 23
        %v660 = vshll.u32 %v628, 23
        %v661 = vshll.u32 %v629, 23
        %v662 = vshll.u32 %v630, 23
        %v663 = vshll.u32 %v631, 23
        %v664 = vshll.u32 %v632, 23
        %v665 = vshll.u32 %v633, 23
        %v666 = vshll.u32 %v634, 23
        %v667 = vshll.u32 %v635, 23
        %v668 = vshll.u32 %v636, 23
        %v669 = vshll.u32 %v637, 23
        %v670 = vshll.u32 %v638, 23
        %v671 = vshll.u32 %v639, 23
        %v672 = vshll.u32 %v640, 23
        %v673 = vshll.u32 %v641, 23
        %v674 = vshll.u32 %v642, 23
        %v675 = vshll.u32 %v643, 23
        %v676 = vshll.u32 %v644, 23
        %v677 = vshll.u32 %v645, 23
        %v678 = vshll.u32 %v646, 23
        %v679 = vshll.u32 %v647, 23
        %v680 = vshll.u32 %v648, 23
        %v681 = vshll.u32 %v649, 23
        %v682 = vshll.u32 %v650, 23
        %v683 = vor.u32 %v651, %v331
        %v684 = vor.u32 %v652, %v332
        %v685 = vor.u32 %v653, %v333
        %v686 = vor.u32 %v654, %v334
        %v687 = vor.u32 %v655, %v335
        %v688 = vor.u32 %v656, %v336
        %v689 = vor.u32 %v657, %v337
        %v690 = vor.u32 %v658, %v338
        %v691 = vor.u32 %v659, %v339
        %v692 = vor.u32 %v660, %v340
        %v693 = vor.u32 %v661, %v341
        %v694 = vor.u32 %v662, %v342
        %v695 = vor.u32 %v663, %v343
        %v696 = vor.u32 %v664, %v344
        %v697 = vor.u32 %v665, %v345
        %v698 = vor.u32 %v666, %v346
        %v699 = vor.u32 %v667, %v347
        %v700 = vor.u32 %v668, %v348
        %v701 = vor.u32 %v669, %v349
        %v702 = vor.u32 %v670, %v350
        %v703 = vor.u32 %v671, %v351
        %v704 = vor.u32 %v672, %v352
        %v705 = vor.u32 %v673, %v353
        %v706 = vor.u32 %v674, %v354
        %v707 = vor.u32 %v675, %v355
        %v708 = vor.u32 %v676, %v356
        %v709 = vor.u32 %v677, %v357
        %v710 = vor.u32 %v678, %v358
        %v711 = vor.u32 %v679, %v359
        %v712 = vor.u32 %v680, %v360
        %v713 = vor.u32 %v681, %v361
        %v714 = vor.u32 %v682, %v362
        %v747 = vand.u32 2147483647, %v267
        %v748 = vand.u32 2147483647, %v268
        %v749 = vand.u32 2147483647, %v269
        %v750 = vand.u32 2147483647, %v270
        %v751 = vand.u32 2147483647, %v271
        %v752 = vand.u32 2147483647, %v272
        %v753 = vand.u32 2147483647, %v273
        %v754 = vand.u32 2147483647, %v274
        %v755 = vand.u32 2147483647, %v275
        %v756 = vand.u32 2147483647, %v276
        %v757 = vand.u32 2147483647, %v277
        %v758 = vand.u32 2147483647, %v278
        %v759 = vand.u32 2147483647, %v279
        %v760 = vand.u32 2147483647, %v280
        %v761 = vand.u32 2147483647, %v281
        %v762 = vand.u32 2147483647, %v282
        %v763 = vand.u32 2147483647, %v283
        %v764 = vand.u32 2147483647, %v284
        %v765 = vand.u32 2147483647, %v285
        %v766 = vand.u32 2147483647, %v286
        %v767 = vand.u32 2147483647, %v287
        %v768 = vand.u32 2147483647, %v288
        %v769 = vand.u32 2147483647, %v289
        %v770 = vand.u32 2147483647, %v290
        %v771 = vand.u32 2147483647, %v291
        %v772 = vand.u32 2147483647, %v292
        %v773 = vand.u32 2147483647, %v293
        %v774 = vand.u32 2147483647, %v294
        %v775 = vand.u32 2147483647, %v295
        %v776 = vand.u32 2147483647, %v296
        %v777 = vand.u32 2147483647, %v297
        %v778 = vand.u32 2147483647, %v298
        %vm779 = vcmp.lt.f32.partialorder %v747, 0.125
        %vm780 = vcmp.lt.f32.partialorder %v748, 0.125
        %vm781 = vcmp.lt.f32.partialorder %v749, 0.125
        %vm782 = vcmp.lt.f32.partialorder %v750, 0.125
        %vm783 = vcmp.lt.f32.partialorder %v751, 0.125
        %vm784 = vcmp.lt.f32.partialorder %v752, 0.125
        %vm785 = vcmp.lt.f32.partialorder %v753, 0.125
        %vm786 = vcmp.lt.f32.partialorder %v754, 0.125
        %vm787 = vcmp.lt.f32.partialorder %v755, 0.125
        %vm788 = vcmp.lt.f32.partialorder %v756, 0.125
        %vm789 = vcmp.lt.f32.partialorder %v757, 0.125
        %vm790 = vcmp.lt.f32.partialorder %v758, 0.125
        %vm791 = vcmp.lt.f32.partialorder %v759, 0.125
        %vm792 = vcmp.lt.f32.partialorder %v760, 0.125
        %vm793 = vcmp.lt.f32.partialorder %v761, 0.125
        %vm794 = vcmp.lt.f32.partialorder %v762, 0.125
        %vm795 = vcmp.lt.f32.partialorder %v763, 0.125
        %vm796 = vcmp.lt.f32.partialorder %v764, 0.125
        %vm797 = vcmp.lt.f32.partialorder %v765, 0.125
        %vm798 = vcmp.lt.f32.partialorder %v766, 0.125
        %vm799 = vcmp.lt.f32.partialorder %v767, 0.125
        %vm800 = vcmp.lt.f32.partialorder %v768, 0.125
        %vm801 = vcmp.lt.f32.partialorder %v769, 0.125
        %vm802 = vcmp.lt.f32.partialorder %v770, 0.125
        %vm803 = vcmp.lt.f32.partialorder %v771, 0.125
        %vm804 = vcmp.lt.f32.partialorder %v772, 0.125
        %vm805 = vcmp.lt.f32.partialorder %v773, 0.125
        %vm806 = vcmp.lt.f32.partialorder %v774, 0.125
        %vm807 = vcmp.lt.f32.partialorder %v775, 0.125
        %vm808 = vcmp.lt.f32.partialorder %v776, 0.125
        %vm809 = vcmp.lt.f32.partialorder %v777, 0.125
        %vm810 = vcmp.lt.f32.partialorder %v778, 0.125
        %v811 = vsel %vm779, 0.0, %v683
        %v812 = vsel %vm780, 0.0, %v684
        %v813 = vsel %vm781, 0.0, %v685
        %v814 = vsel %vm782, 0.0, %v686
        %v815 = vsel %vm783, 0.0, %v687
        %v816 = vsel %vm784, 0.0, %v688
        %v817 = vsel %vm785, 0.0, %v689
        %v818 = vsel %vm786, 0.0, %v690
        %v819 = vsel %vm787, 0.0, %v691
        %v820 = vsel %vm788, 0.0, %v692
        %v821 = vsel %vm789, 0.0, %v693
        %v822 = vsel %vm790, 0.0, %v694
        %v823 = vsel %vm791, 0.0, %v695
        %v824 = vsel %vm792, 0.0, %v696
        %v825 = vsel %vm793, 0.0, %v697
        %v826 = vsel %vm794, 0.0, %v698
        %v827 = vsel %vm795, 0.0, %v699
        %v828 = vsel %vm796, 0.0, %v700
        %v829 = vsel %vm797, 0.0, %v701
        %v830 = vsel %vm798, 0.0, %v702
        %v831 = vsel %vm799, 0.0, %v703
        %v832 = vsel %vm800, 0.0, %v704
        %v833 = vsel %vm801, 0.0, %v705
        %v834 = vsel %vm802, 0.0, %v706
        %v835 = vsel %vm803, 0.0, %v707
        %v836 = vsel %vm804, 0.0, %v708
        %v837 = vsel %vm805, 0.0, %v709
        %v838 = vsel %vm806, 0.0, %v710
        %v839 = vsel %vm807, 0.0, %v711
        %v840 = vsel %vm808, 0.0, %v712
        %v841 = vsel %vm809, 0.0, %v713
        %v842 = vsel %vm810, 0.0, %v714
        %v843 = vstv %s232
        %v844 = vmul.f32 %v843, %v811
        %v845 = vmul.f32 %v843, %v812
        %v846 = vmul.f32 %v843, %v813
        %v847 = vmul.f32 %v843, %v814
        %v848 = vmul.f32 %v843, %v815
        %v849 = vmul.f32 %v843, %v816
        %v850 = vmul.f32 %v843, %v817
        %v851 = vmul.f32 %v843, %v818
        %v852 = vmul.f32 %v843, %v819
        %v853 = vmul.f32 %v843, %v820
        %v854 = vmul.f32 %v843, %v821
        %v855 = vmul.f32 %v843, %v822
        %v856 = vmul.f32 %v843, %v823
        %v857 = vmul.f32 %v843, %v824
        %v858 = vmul.f32 %v843, %v825
        %v859 = vmul.f32 %v843, %v826
        %v860 = vmul.f32 %v843, %v827
        %v861 = vmul.f32 %v843, %v828
        %v862 = vmul.f32 %v843, %v829
        %v863 = vmul.f32 %v843, %v830
        %v864 = vmul.f32 %v843, %v831
        %v865 = vmul.f32 %v843, %v832
        %v866 = vmul.f32 %v843, %v833
        %v867 = vmul.f32 %v843, %v834
        %v868 = vmul.f32 %v843, %v835
        %v869 = vmul.f32 %v843, %v836
        %v870 = vmul.f32 %v843, %v837
        %v871 = vmul.f32 %v843, %v838
        %v872 = vmul.f32 %v843, %v839
        %v873 = vmul.f32 %v843, %v840
        %v874 = vmul.f32 %v843, %v841
        %v875 = vmul.f32 %v843, %v842
        %v876 = vld [vmem:[%s2] sm:$0xff]
        %v877 = vld [vmem:[%s2 + $0x8] sm:$0xff]
        %v878 = vld [vmem:[%s2 + $0x10] sm:$0xff]
        %v879 = vld [vmem:[%s2 + $0x18] sm:$0xff]
        %v880 = vld [vmem:[%s2 + $0x20] sm:$0xff]
        %v881 = vld [vmem:[%s2 + $0x28] sm:$0xff]
        %v882 = vld [vmem:[%s2 + $0x30] sm:$0xff]
        %v883 = vld [vmem:[%s2 + $0x38] sm:$0xff]
        %v884 = vld [vmem:[%s2 + $0x40] sm:$0xff]
        %v885 = vld [vmem:[%s2 + $0x48] sm:$0xff]
        %v886 = vld [vmem:[%s2 + $0x50] sm:$0xff]
        %v887 = vld [vmem:[%s2 + $0x58] sm:$0xff]
        %v888 = vld [vmem:[%s2 + $0x60] sm:$0xff]
        %v889 = vld [vmem:[%s2 + $0x68] sm:$0xff]
        %v890 = vld [vmem:[%s2 + $0x70] sm:$0xff]
        %v891 = vld [vmem:[%s2 + $0x78] sm:$0xff]
        %892 = vmatprep.subr.mxu0 %v845
        %893 = vmatpush1.msra.mxu0 %v844
        %894 = vmatprep.subr.mxu0 %v847
        %895 = vmatpush1.msra.mxu0 %v846
        %896 = vmatprep.subr.mxu0 %v849
        %897 = vmatpush1.msra.mxu0 %v848
        %898 = vmatprep.subr.mxu0 %v851
        %899 = vmatpush1.msra.mxu0 %v850
        %900 = vmatprep.subr.mxu0 %v853
        %901 = vmatpush1.msra.mxu0 %v852
        %902 = vmatprep.subr.mxu0 %v855
        %903 = vmatpush1.msra.mxu0 %v854
        %904 = vmatprep.subr.mxu0 %v857
        %905 = vmatpush1.msra.mxu0 %v856
        %906 = vmatprep.subr.mxu0 %v859
        %907 = vmatpush1.msra.mxu0 %v858
        %908 = vmatprep.subr.mxu0 %v861
        %909 = vmatpush1.msra.mxu0 %v860
        %910 = vmatprep.subr.mxu0 %v863
        %911 = vmatpush1.msra.mxu0 %v862
        %912 = vmatprep.subr.mxu0 %v865
        %913 = vmatpush1.msra.mxu0 %v864
        %914 = vmatprep.subr.mxu0 %v867
        %915 = vmatpush1.msra.mxu0 %v866
        %916 = vmatprep.subr.mxu0 %v869
        %917 = vmatpush1.msra.mxu0 %v868
        %918 = vmatprep.subr.mxu0 %v871
        %919 = vmatpush1.msra.mxu0 %v870
        %920 = vmatprep.subr.mxu0 %v873
        %921 = vmatpush1.msra.mxu0 %v872
        %922 = vmatprep.subr.mxu0 %v875
        %923 = vmatpush1.msra.mxu0 %v874
        %924 = vmatprep.subr.mxu0 0.0
        %925 = vmatpush1.msra.mxu0 0.0
        %926 = vmatprep.subr.mxu0 0.0
        %927 = vmatpush1.msra.mxu0 0.0
        %928 = vmatprep.subr.mxu0 0.0
        %929 = vmatpush1.msra.mxu0 0.0
        %930 = vmatprep.subr.mxu0 0.0
        %931 = vmatpush1.msra.mxu0 0.0
        %932 = vmatprep.subr.mxu0 0.0
        %933 = vmatpush1.msra.mxu0 0.0
        %934 = vmatprep.subr.mxu0 0.0
        %935 = vmatpush1.msra.mxu0 0.0
        %936 = vmatprep.subr.mxu0 0.0
        %937 = vmatpush1.msra.mxu0 0.0
        %938 = vmatprep.subr.mxu0 0.0
        %939 = vmatpush1.msra.mxu0 0.0
        %940 = vmatprep.subr.mxu0 0.0
        %941 = vmatpush1.msra.mxu0 0.0
        %942 = vmatprep.subr.mxu0 0.0
        %943 = vmatpush1.msra.mxu0 0.0
        %944 = vmatprep.subr.mxu0 0.0
        %945 = vmatpush1.msra.mxu0 0.0
        %946 = vmatprep.subr.mxu0 0.0
        %947 = vmatpush1.msra.mxu0 0.0
        %948 = vmatprep.subr.mxu0 0.0
        %949 = vmatpush1.msra.mxu0 0.0
        %950 = vmatprep.subr.mxu0 0.0
        %951 = vmatpush1.msra.mxu0 0.0
        %952 = vmatprep.subr.mxu0 0.0
        %953 = vmatpush1.msra.mxu0 0.0
        %954 = vmatprep.subr.mxu0 0.0
        %955 = vmatpush1.msra.mxu0 0.0
        %956 = vmatprep.mubr.f32.mxu0 0.0
        %957 = vmatmul.mubr.f32.gmra.mrb[0].mxu0 %v876
        %v958 = vpop.f32.mrb[0].mxu0
        %v959 = vadd.f32 0.0, %v958
        %v960 = vpop.f32.mrb[0].mxu0
        %v961 = vadd.f32 0.0, %v960
        %962 = vmatprep.mubr.f32.mxu0 0.0
        %963 = vmatmul.mubr.f32.gmra.mrb[0].mxu0 %v877
        %v964 = vpop.f32.mrb[0].mxu0
        %v965 = vadd.f32 0.0, %v964
        %v966 = vpop.f32.mrb[0].mxu0
        %v967 = vadd.f32 0.0, %v966
        %968 = vmatprep.mubr.f32.mxu0 0.0
        %969 = vmatmul.mubr.f32.gmra.mrb[0].mxu0 %v878
        %v970 = vpop.f32.mrb[0].mxu0
        %v971 = vadd.f32 0.0, %v970
        %v972 = vpop.f32.mrb[0].mxu0
        %v973 = vadd.f32 0.0, %v972
        %974 = vmatprep.mubr.f32.mxu0 0.0
        %975 = vmatmul.mubr.f32.gmra.mrb[0].mxu0 %v879
        %v976 = vpop.f32.mrb[0].mxu0
        %v977 = vadd.f32 0.0, %v976
        %v978 = vpop.f32.mrb[0].mxu0
        %v979 = vadd.f32 0.0, %v978
        %980 = vmatprep.mubr.f32.mxu0 0.0
        %981 = vmatmul.mubr.f32.gmra.mrb[0].mxu0 %v880
        %v982 = vpop.f32.mrb[0].mxu0
        %v983 = vadd.f32 0.0, %v982
        %v984 = vpop.f32.mrb[0].mxu0
        %v985 = vadd.f32 0.0, %v984
        %986 = vmatprep.mubr.f32.mxu0 0.0
        %987 = vmatmul.mubr.f32.gmra.mrb[0].mxu0 %v881
        %v988 = vpop.f32.mrb[0].mxu0
        %v989 = vadd.f32 0.0, %v988
        %v990 = vpop.f32.mrb[0].mxu0
        %v991 = vadd.f32 0.0, %v990
        %992 = vmatprep.mubr.f32.mxu0 0.0
        %993 = vmatmul.mubr.f32.gmra.mrb[0].mxu0 %v882
        %v994 = vpop.f32.mrb[0].mxu0
        %v995 = vadd.f32 0.0, %v994
        %v996 = vpop.f32.mrb[0].mxu0
        %v997 = vadd.f32 0.0, %v996
        %998 = vmatprep.mubr.f32.mxu0 0.0
        %999 = vmatmul.mubr.f32.gmra.mrb[0].mxu0 %v883
        %v1000 = vpop.f32.mrb[0].mxu0
        %v1001 = vadd.f32 0.0, %v1000
        %v1002 = vpop.f32.mrb[0].mxu0
        %v1003 = vadd.f32 0.0, %v1002
        %1004 = vmatprep.mubr.f32.mxu0 0.0
        %1005 = vmatmul.mubr.f32.gmra.mrb[0].mxu0 %v884
        %v1006 = vpop.f32.mrb[0].mxu0
        %v1007 = vadd.f32 0.0, %v1006
        %v1008 = vpop.f32.mrb[0].mxu0
        %v1009 = vadd.f32 0.0, %v1008
        %1010 = vmatprep.mubr.f32.mxu0 0.0
        %1011 = vmatmul.mubr.f32.gmra.mrb[0].mxu0 %v885
        %v1012 = vpop.f32.mrb[0].mxu0
        %v1013 = vadd.f32 0.0, %v1012
        %v1014 = vpop.f32.mrb[0].mxu0
        %v1015 = vadd.f32 0.0, %v1014
        %1016 = vmatprep.mubr.f32.mxu0 0.0
        %1017 = vmatmul.mubr.f32.gmra.mrb[0].mxu0 %v886
        %v1018 = vpop.f32.mrb[0].mxu0
        %v1019 = vadd.f32 0.0, %v1018
        %v1020 = vpop.f32.mrb[0].mxu0
        %v1021 = vadd.f32 0.0, %v1020
        %1022 = vmatprep.mubr.f32.mxu0 0.0
        %1023 = vmatmul.mubr.f32.gmra.mrb[0].mxu0 %v887
        %v1024 = vpop.f32.mrb[0].mxu0
        %v1025 = vadd.f32 0.0, %v1024
        %v1026 = vpop.f32.mrb[0].mxu0
        %v1027 = vadd.f32 0.0, %v1026
        %1028 = vmatprep.mubr.f32.mxu0 0.0
        %1029 = vmatmul.mubr.f32.gmra.mrb[0].mxu0 %v888
        %v1030 = vpop.f32.mrb[0].mxu0
        %v1031 = vadd.f32 0.0, %v1030
        %v1032 = vpop.f32.mrb[0].mxu0
        %v1033 = vadd.f32 0.0, %v1032
        %1034 = vmatprep.mubr.f32.mxu0 0.0
        %1035 = vmatmul.mubr.f32.gmra.mrb[0].mxu0 %v889
        %v1036 = vpop.f32.mrb[0].mxu0
        %v1037 = vadd.f32 0.0, %v1036
        %v1038 = vpop.f32.mrb[0].mxu0
        %v1039 = vadd.f32 0.0, %v1038
        %1040 = vmatprep.mubr.f32.mxu0 0.0
        %1041 = vmatmul.mubr.f32.gmra.mrb[0].mxu0 %v890
        %v1042 = vpop.f32.mrb[0].mxu0
        %v1043 = vadd.f32 0.0, %v1042
        %v1044 = vpop.f32.mrb[0].mxu0
        %v1045 = vadd.f32 0.0, %v1044
        %1046 = vmatprep.mubr.f32.mxu0 0.0
        %1047 = vmatmul.mubr.f32.gmra.mrb[0].mxu0 %v891
        %v1048 = vpop.f32.mrb[0].mxu0
        %v1049 = vadd.f32 0.0, %v1048
        %v1050 = vpop.f32.mrb[0].mxu0
        %v1051 = vadd.f32 0.0, %v1050
        %1052 = vdwg.mxu0
        %v1053 = vmax.f32 %v959, 0.0
        %v1054 = vmax.f32 %v961, 0.0
        %v1055 = vmax.f32 %v965, 0.0
        %v1056 = vmax.f32 %v967, 0.0
        %v1057 = vmax.f32 %v971, 0.0
        %v1058 = vmax.f32 %v973, 0.0
        %v1059 = vmax.f32 %v977, 0.0
        %v1060 = vmax.f32 %v979, 0.0
        %v1061 = vmax.f32 %v983, 0.0
        %v1062 = vmax.f32 %v985, 0.0
        %v1063 = vmax.f32 %v989, 0.0
        %v1064 = vmax.f32 %v991, 0.0
        %v1065 = vmax.f32 %v995, 0.0
        %v1066 = vmax.f32 %v997, 0.0
        %v1067 = vmax.f32 %v1001, 0.0
        %v1068 = vmax.f32 %v1003, 0.0
        %v1069 = vmax.f32 %v1007, 0.0
        %v1070 = vmax.f32 %v1009, 0.0
        %v1071 = vmax.f32 %v1013, 0.0
        %v1072 = vmax.f32 %v1015, 0.0
        %v1073 = vmax.f32 %v1019, 0.0
        %v1074 = vmax.f32 %v1021, 0.0
        %v1075 = vmax.f32 %v1025, 0.0
        %v1076 = vmax.f32 %v1027, 0.0
        %v1077 = vmax.f32 %v1031, 0.0
        %v1078 = vmax.f32 %v1033, 0.0
        %v1079 = vmax.f32 %v1037, 0.0
        %v1080 = vmax.f32 %v1039, 0.0
        %v1081 = vmax.f32 %v1043, 0.0
        %v1082 = vmax.f32 %v1045, 0.0
        %v1083 = vmax.f32 %v1049, 0.0
        %v1084 = vmax.f32 %v1051, 0.0
        %v1085 = vld [vmem:[%s3] sm:$0xff]
        %v1086 = vld [vmem:[%s3 + $0x8] sm:$0xff]
        %v1087 = vld [vmem:[%s3 + $0x10] sm:$0xff]
        %v1088 = vld [vmem:[%s3 + $0x18] sm:$0xff]
        %v1089 = vld [vmem:[%s3 + $0x20] sm:$0xff]
        %v1090 = vld [vmem:[%s3 + $0x28] sm:$0xff]
        %v1091 = vld [vmem:[%s3 + $0x30] sm:$0xff]
        %v1092 = vld [vmem:[%s3 + $0x38] sm:$0xff]
        %v1093 = vld [vmem:[%s3 + $0x40] sm:$0xff]
        %v1094 = vld [vmem:[%s3 + $0x48] sm:$0xff]
        %v1095 = vld [vmem:[%s3 + $0x50] sm:$0xff]
        %v1096 = vld [vmem:[%s3 + $0x58] sm:$0xff]
        %v1097 = vld [vmem:[%s3 + $0x60] sm:$0xff]
        %v1098 = vld [vmem:[%s3 + $0x68] sm:$0xff]
        %v1099 = vld [vmem:[%s3 + $0x70] sm:$0xff]
        %v1100 = vld [vmem:[%s3 + $0x78] sm:$0xff]
        %1102 = vset.pattern.permute.xlu0 0
        %1103 = vperm.xlu0 %1102, %v1085
        %v1104 = vpop.permute.xlu0 %1103
        %1107 = vset.pattern.permute.xlu0 0
        %1108 = vperm.xlu0 %1107, %v1086
        %v1109 = vpop.permute.xlu0 %1108
        %1112 = vset.pattern.permute.xlu0 0
        %1113 = vperm.xlu0 %1112, %v1087
        %v1114 = vpop.permute.xlu0 %1113
        %1117 = vset.pattern.permute.xlu0 0
        %1118 = vperm.xlu0 %1117, %v1088
        %v1119 = vpop.permute.xlu0 %1118
        %1122 = vset.pattern.permute.xlu0 0
        %1123 = vperm.xlu0 %1122, %v1089
        %v1124 = vpop.permute.xlu0 %1123
        %1127 = vset.pattern.permute.xlu0 0
        %1128 = vperm.xlu0 %1127, %v1090
        %v1129 = vpop.permute.xlu0 %1128
        %1132 = vset.pattern.permute.xlu0 0
        %1133 = vperm.xlu0 %1132, %v1091
        %v1134 = vpop.permute.xlu0 %1133
        %1137 = vset.pattern.permute.xlu0 0
        %1138 = vperm.xlu0 %1137, %v1092
        %v1139 = vpop.permute.xlu0 %1138
        %1142 = vset.pattern.permute.xlu0 0
        %1143 = vperm.xlu0 %1142, %v1093
        %v1144 = vpop.permute.xlu0 %1143
        %1147 = vset.pattern.permute.xlu0 0
        %1148 = vperm.xlu0 %1147, %v1094
        %v1149 = vpop.permute.xlu0 %1148
        %1152 = vset.pattern.permute.xlu0 0
        %1153 = vperm.xlu0 %1152, %v1095
        %v1154 = vpop.permute.xlu0 %1153
        %1157 = vset.pattern.permute.xlu0 0
        %1158 = vperm.xlu0 %1157, %v1096
        %v1159 = vpop.permute.xlu0 %1158
        %1162 = vset.pattern.permute.xlu0 0
        %1163 = vperm.xlu0 %1162, %v1097
        %v1164 = vpop.permute.xlu0 %1163
        %1167 = vset.pattern.permute.xlu0 0
        %1168 = vperm.xlu0 %1167, %v1098
        %v1169 = vpop.permute.xlu0 %1168
        %1172 = vset.pattern.permute.xlu0 0
        %1173 = vperm.xlu0 %1172, %v1099
        %v1174 = vpop.permute.xlu0 %1173
        %1177 = vset.pattern.permute.xlu0 0
        %1178 = vperm.xlu0 %1177, %v1100
        %v1179 = vpop.permute.xlu0 %1178
        %v1181 = vmul.f32 %v1053, %v1104
        %v1182 = vmul.f32 %v1054, %v1104
        %v1183 = vmul.f32 %v1055, %v1109
        %v1184 = vmul.f32 %v1056, %v1109
        %v1185 = vmul.f32 %v1057, %v1114
        %v1186 = vmul.f32 %v1058, %v1114
        %v1187 = vmul.f32 %v1059, %v1119
        %v1188 = vmul.f32 %v1060, %v1119
        %v1189 = vmul.f32 %v1061, %v1124
        %v1190 = vmul.f32 %v1062, %v1124
        %v1191 = vmul.f32 %v1063, %v1129
        %v1192 = vmul.f32 %v1064, %v1129
        %v1193 = vmul.f32 %v1065, %v1134
        %v1194 = vmul.f32 %v1066, %v1134
        %v1195 = vmul.f32 %v1067, %v1139
        %v1196 = vmul.f32 %v1068, %v1139
        %v1197 = vmul.f32 %v1069, %v1144
        %v1198 = vmul.f32 %v1070, %v1144
        %v1199 = vmul.f32 %v1071, %v1149
        %v1200 = vmul.f32 %v1072, %v1149
        %v1201 = vmul.f32 %v1073, %v1154
        %v1202 = vmul.f32 %v1074, %v1154
        %v1203 = vmul.f32 %v1075, %v1159
        %v1204 = vmul.f32 %v1076, %v1159
        %v1205 = vmul.f32 %v1077, %v1164
        %v1206 = vmul.f32 %v1078, %v1164
        %v1207 = vmul.f32 %v1079, %v1169
        %v1208 = vmul.f32 %v1080, %v1169
        %v1209 = vmul.f32 %v1081, %v1174
        %v1210 = vmul.f32 %v1082, %v1174
        %v1211 = vmul.f32 %v1083, %v1179
        %v1212 = vmul.f32 %v1084, %v1179
        %v1213 = vadd.f32 %v1181, %v1183
        %v1214 = vadd.f32 %v1213, %v1185
        %v1215 = vadd.f32 %v1214, %v1187
        %v1216 = vadd.f32 %v1215, %v1189
        %v1217 = vadd.f32 %v1216, %v1191
        %v1218 = vadd.f32 %v1217, %v1193
        %v1219 = vadd.f32 %v1218, %v1195
        %v1220 = vadd.f32 %v1219, %v1197
        %v1221 = vadd.f32 %v1220, %v1199
        %v1222 = vadd.f32 %v1221, %v1201
        %v1223 = vadd.f32 %v1222, %v1203
        %v1224 = vadd.f32 %v1223, %v1205
        %v1225 = vadd.f32 %v1224, %v1207
        %v1226 = vadd.f32 %v1225, %v1209
        %v1227 = vadd.f32 %v1226, %v1211
        %v1228 = vrot.slane %v1227, 4
        %v1229 = vadd.f32 %v1227, %v1228
        %v1230 = vrot.slane %v1229, 2
        %v1231 = vadd.f32 %v1229, %v1230
        %v1232 = vrot.slane %v1231, 1
        %v1233 = vadd.f32 %v1231, %v1232
        %v1234 = vadd.f32 %v1182, %v1184
        %v1235 = vadd.f32 %v1234, %v1186
        %v1236 = vadd.f32 %v1235, %v1188
        %v1237 = vadd.f32 %v1236, %v1190
        %v1238 = vadd.f32 %v1237, %v1192
        %v1239 = vadd.f32 %v1238, %v1194
        %v1240 = vadd.f32 %v1239, %v1196
        %v1241 = vadd.f32 %v1240, %v1198
        %v1242 = vadd.f32 %v1241, %v1200
        %v1243 = vadd.f32 %v1242, %v1202
        %v1244 = vadd.f32 %v1243, %v1204
        %v1245 = vadd.f32 %v1244, %v1206
        %v1246 = vadd.f32 %v1245, %v1208
        %v1247 = vadd.f32 %v1246, %v1210
        %v1248 = vadd.f32 %v1247, %v1212
        %v1249 = vrot.slane %v1248, 4
        %v1250 = vadd.f32 %v1248, %v1249
        %v1251 = vrot.slane %v1250, 2
        %v1252 = vadd.f32 %v1250, %v1251
        %v1253 = vrot.slane %v1252, 1
        %v1254 = vadd.f32 %v1252, %v1253
        %v1257 = vcombine.low %v1233, %v1254
        %v1259 = vunpack.c.l.s4 1966171168
        %v1260 = vunpack.c.0.s8 %v1259
        %v1261 = vlaneseq
        %v1262 = vshrl.u32 %v1261, 7
        %v1263 = vsub.s32 %v1260, %v1262
        %v1264 = vrot.slane %v1257, %v1263
        %v1266 = vunpack.c.l.s4 1966171168
        %v1267 = vunpack.c.0.s8 %v1266
        %v1268 = vlaneseq
        %v1269 = vshrl.u32 %v1268, 7
        %v1270 = vsub.s32 %v1267, %v1269
        %v1271 = vrot.slane %v1264, %v1270
        %v1273 = vlaneseq
        %vm1274 = vcmp.ge.s32.totalorder %v1273, 0
        %vm1275 = vcmp.lt.s32.totalorder %v1273, 256
        %vm1276 = vmand %vm1274, %vm1275
        %1277 = vst.msk [vmem:[%s229] sm:$0x3] %vm1276, %v1271
        %s1278 = sand.u32 %s119, 1
        %s1279 = scalar_lea.sflag [#allocation4], %s1278
        %s1280 = sand.u32 %s119, 1
        %s1281 = smul.addr %s1280, 2
        %s1282 = scalar_lea.vmem [#allocation7], %s1281
        // Predicated region
        $region45: #{tpu_custom_call.1} parent=35 // pred_check
          %p1283 = pneg %p129
        $region46: #{tpu_custom_call.1} parent=35 // pred_check_branch
          %1285 = sbr.rel (%p1283) target = $region48
        $region47: #{tpu_custom_call.1} parent=35 // pred_region
          %s1286 = smul.u32 2, %s22
          %s1288 = ssub.s32 32, 32
          %1289 = vsyncadd %s1279, %s1288
          %s1290 = smul.addr %s1286, 16
          %s1291 = scalar_lea.hbm %s4, %s1290
          %s1293 = sshll.u32 %s1282, 4
          %s1294 = int_to_ptr.vmem [resolvable:$true] %s1293
          %1296 = dma.vmem_to_hbm [thread:$0]  %s1294, 32, %s1291, %s1279
        $region48: #{tpu_custom_call.1} parent=35 // pred_fallthru
          _
      $region36: #{tpu_custom_call.1} parent=5 // pred_fallthru
        _
      %p1297 = scmp.le.s32.totalorder 2, %s17
      // Predicated region
      $region49: #{tpu_custom_call.1} parent=5 // pred_check
        %p1298 = pneg %p1297
      $region50: #{tpu_custom_call.1} parent=5 // pred_check_branch
        %1300 = sbr.rel (%p1298) target = $region52
      $region51: #{tpu_custom_call.1} parent=5 // pred_region
        %s1301 = ssub.s32 %s17, 2
        // Predicated region
        $region53: #{tpu_custom_call.1} parent=51 // pred_check
          %p1302 = pneg %p135
        $region54: #{tpu_custom_call.1} parent=51 // pred_check_branch
          %1304 = sbr.rel (%p1302) target = $region56
        $region55: #{tpu_custom_call.1} parent=51 // pred_region
          %s1305 = sand.u32 %s120, 1
          %s1306 = scalar_lea.sflag [#allocation4], %s1305
          %s1307 = sand.u32 %s120, 1
          %s1308 = smul.addr %s1307, 2
          %s1309 = scalar_lea.vmem [#allocation7], %s1308
          %1310 = dma.done %s1306, 32
        $region56: #{tpu_custom_call.1} parent=51 // pred_fallthru
          _
      $region52: #{tpu_custom_call.1} parent=5 // pred_fallthru
        _
    $region6: #{tpu_custom_call.1} parent=1 // loop_footer
      %s21 = sadd.s32 1, %s17
    $region7: #{tpu_custom_call.1} parent=1 // loop_footer_branch
      %16 = sbr.rel target = $region3
    $region8: #{tpu_custom_call.1} parent=1 // loop_exit
      _
    %1311 = vsyncpa [#allocation3], 1
    %s1312 = scalar_lea.sflag [#allocation3], 1
    %1313 = vsyncpa %s1312, 1
    %1314 = vsyncpa [#allocation4], 1
    %s1315 = scalar_lea.sflag [#allocation4], 1
    %1316 = vsyncpa %s1315, 1
    %1317 = vsyncpa [#allocation5], 1
    %s1318 = scalar_lea.sflag [#allocation5], 1
    %1319 = vsyncpa %s1318, 1

</llo_original>
